<compile_context>
chip_gen: v7x
topology: tpu7x:2x2x1
jax: 0.10.0
libtpu: 0.0.40
codegen_flags: <defaults>
</compile_context>

<pallas_src>
import numpy as np
import jax
import jax.numpy as jnp
from jax.experimental import pallas as pl
from jax.experimental.pallas import tpu as pltpu


def _haar_pair_matrices(W):
    """Constant (W, W/2) matrices implementing the horizontal Haar pass as x @ P.

    Mirrors get_wav(): each 2x2 filter separates into a vertical [1,1] / [-1,1] pass (done on the
    VPU) and a horizontal [0.5,0.5] / [-0.5,0.5] pass; the latter is a sparse pairing matrix so
    the stride-2 column combination happens on the MXU instead of with strided lane loads.
    """
    W2 = W // 2
    # float64 -> float32 exactly like torch's .float(); (1/sqrt(2))**2 rounds to 0.5f.
    h = np.float32((1.0 / np.sqrt(2.0)) * (1.0 / np.sqrt(2.0)))
    psum = np.zeros((W, W2), np.float32)
    pdiff = np.zeros((W, W2), np.float32)
    cols = np.arange(W2)
    psum[2 * cols, cols] = h
    psum[2 * cols + 1, cols] = h
    pdiff[2 * cols, cols] = -h
    pdiff[2 * cols + 1, cols] = h
    return jnp.asarray(psum), jnp.asarray(pdiff)


def _wavepool_kernel(psum_ref, pdiff_ref, x_ref, ll_ref, lh_ref, hl_ref, hh_ref):
    W = psum_ref.shape[0]
    x = x_ref[...].astype(jnp.float32)   # (TM, 2W): [image row 2i | image row 2i+1] per kernel row
    xe = x[:, :W]                        # even image rows (contiguous lane slice)
    xo = x[:, W:]                        # odd image rows  (contiguous lane slice)
    s = xe + xo                          # vertical low-pass  (VPU)
    d = xo - xe                          # vertical high-pass (VPU)
    psum = psum_ref[...]
    pdiff = pdiff_ref[...]
    # Horizontal pass on the MXU: combines lanes (2j, 2j+1) -> j with the +-0.5 Haar weights.
    ll_ref[...] = jnp.dot(s, psum, preferred_element_type=jnp.float32).astype(ll_ref.dtype)
    lh_ref[...] = jnp.dot(s, pdiff, preferred_element_type=jnp.float32).astype(lh_ref.dtype)
    hl_ref[...] = jnp.dot(d, psum, preferred_element_type=jnp.float32).astype(hl_ref.dtype)
    hh_ref[...] = jnp.dot(d, pdiff, preferred_element_type=jnp.float32).astype(hh_ref.dtype)


def _pick_row_tile(rows, row_bytes, target_bytes=1 << 20):
    """Largest multiple-of-8 divisor of `rows` giving ~target_bytes blocks and >= ~8 grid steps."""
    cap = max(8, min(target_bytes // max(row_bytes, 1), max(1, rows // 8)))
    cap = min(cap, rows)
    best = None
    for d in range(8, cap + 1, 8):
        if rows % d == 0:
            best = d
    return best if best is not None else rows   # fallback: single block (still correct)


@jax.jit
def wave_pool(x):
    """x: (B, C, H, W) float32 NCHW. Returns (LL, LH, HL, HH), each (B, C, H//2, W//2)."""
    B, C, H, W = x.shape
    assert H % 2 == 0 and W % 2 == 0, "H and W must be even for 2x2 / stride-2 pooling"
    H2, W2 = H // 2, W // 2
    rows = B * C * H2

    # FREE reshape (contiguous, no transpose): each row = concat(image row 2i, image row 2i+1).
    xr = x.reshape(rows, 2 * W)
    psum, pdiff = _haar_pair_matrices(W)

    tm = _pick_row_tile(rows, 2 * W * x.dtype.itemsize)
    grid = (rows // tm,)

    out_sd = jax.ShapeDtypeStruct((rows, W2), x.dtype)
    w_spec = pl.BlockSpec((W, W2), lambda i: (0, 0))     # constant block index -> fetched once

    outs = pl.pallas_call(
        _wavepool_kernel,
        grid=grid,
        in_specs=[w_spec, w_spec,
                  pl.BlockSpec((tm, 2 * W), lambda i: (i, 0))],
        out_specs=[pl.BlockSpec((tm, W2), lambda i: (i, 0))] * 4,
        out_shape=(out_sd,) * 4,
        compiler_params=pltpu.CompilerParams(
            dimension_semantics=("parallel",),
            vmem_limit_bytes=32 * 1024 * 1024,
        ),
    )(psum, pdiff, xr)

    # FREE reshape back to NCHW halves.
    return tuple(o.reshape(B, C, H2, W2) for o in outs)


if __name__ == "__main__":
    key = jax.random.PRNGKey(0)
    B, C, H, W = 2, 4, 16, 16
    x = jax.random.normal(key, (B, C, H, W), dtype=jnp.float32)

    ll, lh, hl, hh = jax.block_until_ready(wave_pool(x))

    # Reference: the depthwise 2x2 / stride-2 conv with the Haar filters from get_wav().
    xn = np.asarray(x)
    a = xn[:, :, 0::2, 0::2]
    b = xn[:, :, 0::2, 1::2]
    c = xn[:, :, 1::2, 0::2]
    d = xn[:, :, 1::2, 1::2]
    L = (1.0 / np.sqrt(2)) * np.ones((1, 2))
    Hf = (1.0 / np.sqrt(2)) * np.ones((1, 2))
    Hf[0, 0] *= -1.0
    filters = [np.transpose(L) * L, np.transpose(L) * Hf, np.transpose(Hf) * L, np.transpose(Hf) * Hf]
    filters = [f.astype(np.float32) for f in filters]
    refs = [f[0, 0] * a + f[0, 1] * b + f[1, 0] * c + f[1, 1] * d for f in filters]

    for got, exp in zip((ll, lh, hl, hh), refs):
        assert got.shape == (B, C, H // 2, W // 2) and got.dtype == jnp.float32
        np.testing.assert_allclose(np.asarray(got), exp, rtol=1e-5, atol=1e-6)

    print("KERNEL_OK")
</pallas_src>

<mosaic_0001>
module attributes {stable_mosaic.version = 11 : i64} {
  func.func @_wavepool_kernel(%arg0: i32, %arg1: memref<16x8xf32, #tpu.memory_space<vmem>>, %arg2: memref<16x8xf32, #tpu.memory_space<vmem>>, %arg3: memref<8x32xf32, #tpu.memory_space<vmem>>, %arg4: memref<8x8xf32, #tpu.memory_space<vmem>>, %arg5: memref<8x8xf32, #tpu.memory_space<vmem>>, %arg6: memref<8x8xf32, #tpu.memory_space<vmem>>, %arg7: memref<8x8xf32, #tpu.memory_space<vmem>>) attributes {dimension_semantics = [#tpu.dimension_semantics<parallel>], iteration_bounds = array<i64: 8>, scalar_prefetch = 0 : i64, scratch_operands = 0 : i64, tpu.core_type = #tpu.core_type<tc>, window_params = [{pipeline_mode = #tpu.pipeline_mode<synchronous>, transform_indices = @transform_0, window_bounds = array<i64: 16, 8>}, {pipeline_mode = #tpu.pipeline_mode<synchronous>, transform_indices = @transform_1, window_bounds = array<i64: 16, 8>}, {transform_indices = @transform_2, window_bounds = array<i64: 8, 32>}, {transform_indices = @transform_3, window_bounds = array<i64: 8, 8>}, {transform_indices = @transform_4, window_bounds = array<i64: 8, 8>}, {transform_indices = @transform_5, window_bounds = array<i64: 8, 8>}, {transform_indices = @transform_6, window_bounds = array<i64: 8, 8>}]} {
    %c0 = arith.constant 0 : index
    %c0_0 = arith.constant 0 : index
    %0 = vector.load %arg3[%c0, %c0_0] : memref<8x32xf32, #tpu.memory_space<vmem>>, vector<8x32xf32>
    %1 = vector.extract_strided_slice %0 {offsets = [0, 0], sizes = [8, 16], strides = [1, 1]} : vector<8x32xf32> to vector<8x16xf32>
    %2 = vector.extract_strided_slice %0 {offsets = [0, 16], sizes = [8, 16], strides = [1, 1]} : vector<8x32xf32> to vector<8x16xf32>
    %3 = arith.addf %1, %2 : vector<8x16xf32>
    %4 = arith.subf %2, %1 : vector<8x16xf32>
    %c0_1 = arith.constant 0 : index
    %c0_2 = arith.constant 0 : index
    %5 = vector.load %arg1[%c0_1, %c0_2] : memref<16x8xf32, #tpu.memory_space<vmem>>, vector<16x8xf32>
    %c0_3 = arith.constant 0 : index
    %c0_4 = arith.constant 0 : index
    %6 = vector.load %arg2[%c0_3, %c0_4] : memref<16x8xf32, #tpu.memory_space<vmem>>, vector<16x8xf32>
    %cst = arith.constant dense<0.000000e+00> : vector<8x8xf32>
    %7 = tpu.matmul %3, %5, %cst {dimension_numbers = #tpu.dot_dimension_numbers<[1], [0], [0], [1], [0, 0, 1, 1], [], []>} : vector<8x16xf32>, vector<16x8xf32>, vector<8x8xf32> -> vector<8x8xf32>
    %c0_5 = arith.constant 0 : index
    %c0_6 = arith.constant 0 : index
    %8 = vector.load %arg4[%c0_5, %c0_6] : memref<8x8xf32, #tpu.memory_space<vmem>>, vector<8x8xf32>
    tpu.vector_store %arg4[%c0_5, %c0_6], %7 {strides = array<i32>} : memref<8x8xf32, #tpu.memory_space<vmem>>, vector<8x8xf32>,
    %cst_7 = arith.constant dense<0.000000e+00> : vector<8x8xf32>
    %9 = tpu.matmul %3, %6, %cst_7 {dimension_numbers = #tpu.dot_dimension_numbers<[1], [0], [0], [1], [0, 0, 1, 1], [], []>} : vector<8x16xf32>, vector<16x8xf32>, vector<8x8xf32> -> vector<8x8xf32>
    %c0_8 = arith.constant 0 : index
    %c0_9 = arith.constant 0 : index
    %10 = vector.load %arg5[%c0_8, %c0_9] : memref<8x8xf32, #tpu.memory_space<vmem>>, vector<8x8xf32>
    tpu.vector_store %arg5[%c0_8, %c0_9], %9 {strides = array<i32>} : memref<8x8xf32, #tpu.memory_space<vmem>>, vector<8x8xf32>,
    %cst_10 = arith.constant dense<0.000000e+00> : vector<8x8xf32>
    %11 = tpu.matmul %4, %5, %cst_10 {dimension_numbers = #tpu.dot_dimension_numbers<[1], [0], [0], [1], [0, 0, 1, 1], [], []>} : vector<8x16xf32>, vector<16x8xf32>, vector<8x8xf32> -> vector<8x8xf32>
    %c0_11 = arith.constant 0 : index
    %c0_12 = arith.constant 0 : index
    %12 = vector.load %arg6[%c0_11, %c0_12] : memref<8x8xf32, #tpu.memory_space<vmem>>, vector<8x8xf32>
    tpu.vector_store %arg6[%c0_11, %c0_12], %11 {strides = array<i32>} : memref<8x8xf32, #tpu.memory_space<vmem>>, vector<8x8xf32>,
    %cst_13 = arith.constant dense<0.000000e+00> : vector<8x8xf32>
    %13 = tpu.matmul %4, %6, %cst_13 {dimension_numbers = #tpu.dot_dimension_numbers<[1], [0], [0], [1], [0, 0, 1, 1], [], []>} : vector<8x16xf32>, vector<16x8xf32>, vector<8x8xf32> -> vector<8x8xf32>
    %c0_14 = arith.constant 0 : index
    %c0_15 = arith.constant 0 : index
    %14 = vector.load %arg7[%c0_14, %c0_15] : memref<8x8xf32, #tpu.memory_space<vmem>>, vector<8x8xf32>
    tpu.vector_store %arg7[%c0_14, %c0_15], %13 {strides = array<i32>} : memref<8x8xf32, #tpu.memory_space<vmem>>, vector<8x8xf32>,
    return
  }
  func.func @transform_0(%arg0: i32) -> (i32, i32) {
    %c0_i32 = arith.constant 0 : i32
    %c0_i32_0 = arith.constant 0 : i32
    %c0_i32_1 = arith.constant 0 : i32
    return %c0_i32, %c0_i32_0 : i32, i32
  }
  func.func @transform_1(%arg0: i32) -> (i32, i32) {
    %c0_i32 = arith.constant 0 : i32
    %c0_i32_0 = arith.constant 0 : i32
    %c0_i32_1 = arith.constant 0 : i32
    return %c0_i32, %c0_i32_0 : i32, i32
  }
  func.func @transform_2(%arg0: i32) -> (i32, i32) {
    %c0_i32 = arith.constant 0 : i32
    %c0_i32_0 = arith.constant 0 : i32
    return %arg0, %c0_i32 : i32, i32
  }
  func.func @transform_3(%arg0: i32) -> (i32, i32) {
    %c0_i32 = arith.constant 0 : i32
    %c0_i32_0 = arith.constant 0 : i32
    return %arg0, %c0_i32 : i32, i32
  }
  func.func @transform_4(%arg0: i32) -> (i32, i32) {
    %c0_i32 = arith.constant 0 : i32
    %c0_i32_0 = arith.constant 0 : i32
    return %arg0, %c0_i32 : i32, i32
  }
  func.func @transform_5(%arg0: i32) -> (i32, i32) {
    %c0_i32 = arith.constant 0 : i32
    %c0_i32_0 = arith.constant 0 : i32
    return %arg0, %c0_i32 : i32, i32
  }
  func.func @transform_6(%arg0: i32) -> (i32, i32) {
    %c0_i32 = arith.constant 0 : i32
    %c0_i32_0 = arith.constant 0 : i32
    return %arg0, %c0_i32 : i32, i32
  }
}

</mosaic_0001>

<llo_original>
// kernel: wave_pool.1
$region0: #{wave_pool.1}
  #allocation0 [shape = 'u32[]', space=smem, size = 0x4, offset = 0x4, fixed_abs, tag = 'smem constant byte address 0x4 - core index']
  #allocation1 [shape = 'u32[144,128]{1,0:T(1,128)}', space=vmem, size = 0x12000, scoped, tag = 'internal scratch']
  %s0 = inlined_call_operand.vmem [shape: f32[16,8], index: 0, kind: input, shape index: {}]
  %s1 = inlined_call_operand.vmem [shape: f32[16,8], index: 1, kind: input, shape index: {}]
  %s2 = inlined_call_operand.vmem [shape: f32[64,32], index: 2, kind: input, shape index: {}]
  %s3 = inlined_call_operand.hbm [shape: f32[64,8], index: 3, kind: output, shape index: {0}]
  %s4 = inlined_call_operand.hbm [shape: f32[64,8], index: 4, kind: output, shape index: {1}]
  %s5 = inlined_call_operand.hbm [shape: f32[64,8], index: 5, kind: output, shape index: {2}]
  %s6 = inlined_call_operand.hbm [shape: f32[64,8], index: 6, kind: output, shape index: {3}]
  %7 = xla_tuple %s3, %s4, %s5, %s6
  %s8 = sld [smem:[#allocation0]]
  $region69: #{wave_pool.1} parent=0
    _
  %s10 = ssub.s32 1, %s8
  %s11 = scalar_select 0, %s10, %s8
  $region1: #{wave_pool.1} parent=0
    #allocation2 [shape = 'u8[8192]{0}', space=vmem, size = 0x2000, scoped, tag = 'output window, operand 0']
    #allocation3 [shape = 's32[2]{0}', space=sflag, size = 0x8, scoped, tag = 'scoped memory for wave_pool.1']
    #allocation4 [shape = 'u8[8192]{0}', space=vmem, size = 0x2000, scoped, tag = 'output window, operand 1']
    #allocation5 [shape = 's32[2]{0}', space=sflag, size = 0x8, scoped, tag = 'scoped memory for wave_pool.1']
    #allocation6 [shape = 'u8[8192]{0}', space=vmem, size = 0x2000, scoped, tag = 'output window, operand 2']
    #allocation7 [shape = 'u8[8192]{0}', space=vmem, size = 0x2000, scoped, tag = 'output window, operand 3']
    #allocation8 [shape = 's32[2]{0}', space=sflag, size = 0x8, scoped, tag = 'scoped memory for wave_pool.1']
    %12 = vsyncpa [#allocation3], 0
    %s13 = scalar_lea.sflag [#allocation3], 1
    %14 = vsyncpa %s13, 0
    %15 = vsyncpa [#allocation5], 0
    %s16 = scalar_lea.sflag [#allocation5], 1
    %17 = vsyncpa %s16, 0
    %18 = vsyncpa [#allocation8], 0
    %s19 = scalar_lea.sflag [#allocation8], 1
    %20 = vsyncpa %s19, 0
    loop: start=0, step=1, limit=10
    $region2: #{wave_pool.1} parent=1 // loop_pre_header
      _
    $region3: #{wave_pool.1} parent=1 // loop_header
      %s22 = sphi 0, %s26
      %p23 = scmp.ge.s32.totalorder %s22, 10
      %s30 = sphi 0, %s30
      %s32 = sphi 0, %s30
      %s33 = sphi 0, %s32
      %s47 = sphi 0, %s33
      %s51 = sphi 0, %s51
      %s53 = sphi 0, %s51
      %s54 = sphi 0, %s53
      %s68 = sphi 0, %s54
      %s74 = sphi 0, %s76
      %s77 = sphi 0, %s74
      %s78 = sphi 0, %s77
      %s94 = sphi 0, %s78
      %s100 = sphi 0, %s102
      %s103 = sphi 0, %s100
      %s104 = sphi 0, %s103
      %s120 = sphi 0, %s104
      %s126 = sphi 0, %s128
      %s129 = sphi 0, %s126
      %s130 = sphi 0, %s129
      %s146 = sphi 0, %s130
      %s152 = sphi 0, %s154
      %s155 = sphi 0, %s152
      %s156 = sphi 0, %s155
      %s172 = sphi 0, %s156
      %s178 = sphi 0, %s180
      %s181 = sphi 0, %s178
      %s182 = sphi 0, %s181
      %s198 = sphi 0, %s182
    $region4: #{wave_pool.1} parent=1 // loop_header_branch
      %25 = sbr.rel (%p23) target = $region8
    $region5: #{wave_pool.1} parent=1 // loop_body
      %s27 = ssub.s32 %s22, 1
      %s28 = ssub.s32 %s22, 2
      %s29 = sadd.s32 %s22, 1
      %s31 = sadd.s32 %s30, 1
      %p34 = scmp.eq.s32.totalorder %s22, 7
      %p35 = scmp.ne.s32.totalorder %s30, %s32
      %p36 = scmp.eq.s32.totalorder %s22, 0
      %p37 = por %p35, %p36
      %p38 = scmp.ne.s32.totalorder %s30, %s32
      %p39 = scmp.eq.s32.totalorder %s27, 7
      %p40 = por %p38, %p39
      %p41 = scmp.ne.s32.totalorder %s32, %s33
      %p42 = scmp.eq.s32.totalorder %s27, 0
      %p43 = por %p41, %p42
      %p44 = scmp.ne.s32.totalorder %s32, %s33
      %p45 = scmp.eq.s32.totalorder %s28, 7
      %p46 = por %p44, %p45
      %p48 = scmp.ne.s32.totalorder %s33, %s47
      %p49 = scmp.eq.s32.totalorder %s28, 0
      %p50 = por %p48, %p49
      %s52 = sadd.s32 %s51, 1
      %p55 = scmp.eq.s32.totalorder %s22, 7
      %p56 = scmp.ne.s32.totalorder %s51, %s53
      %p57 = scmp.eq.s32.totalorder %s22, 0
      %p58 = por %p56, %p57
      %p59 = scmp.ne.s32.totalorder %s51, %s53
      %p60 = scmp.eq.s32.totalorder %s27, 7
      %p61 = por %p59, %p60
      %p62 = scmp.ne.s32.totalorder %s53, %s54
      %p63 = scmp.eq.s32.totalorder %s27, 0
      %p64 = por %p62, %p63
      %p65 = scmp.ne.s32.totalorder %s53, %s54
      %p66 = scmp.eq.s32.totalorder %s28, 7
      %p67 = por %p65, %p66
      %p69 = scmp.ne.s32.totalorder %s54, %s68
      %p70 = scmp.eq.s32.totalorder %s28, 0
      %p71 = por %p69, %p70
      %s72 = ssub.s32 %s22, %s29
      %p73 = scmp.eq.s32.totalorder %s72, 0
      %s75 = sadd.s32 %s74, 1
      %s76 = scalar_select %p73, %s74, %s75
      %p79 = pneg %p73
      %p80 = scmp.eq.s32.totalorder %s22, 7
      %p81 = por %p79, %p80
      %p82 = scmp.ne.s32.totalorder %s74, %s77
      %p83 = scmp.eq.s32.totalorder %s22, 0
      %p84 = por %p82, %p83
      %p85 = scmp.ne.s32.totalorder %s74, %s77
      %p86 = scmp.eq.s32.totalorder %s27, 7
      %p87 = por %p85, %p86
      %p88 = scmp.ne.s32.totalorder %s77, %s78
      %p89 = scmp.eq.s32.totalorder %s27, 0
      %p90 = por %p88, %p89
      %p91 = scmp.ne.s32.totalorder %s77, %s78
      %p92 = scmp.eq.s32.totalorder %s28, 7
      %p93 = por %p91, %p92
      %p95 = scmp.ne.s32.totalorder %s78, %s94
      %p96 = scmp.eq.s32.totalorder %s28, 0
      %p97 = por %p95, %p96
      %s98 = ssub.s32 %s22, %s29
      %p99 = scmp.eq.s32.totalorder %s98, 0
      %s101 = sadd.s32 %s100, 1
      %s102 = scalar_select %p99, %s100, %s101
      %p105 = pneg %p99
      %p106 = scmp.eq.s32.totalorder %s22, 7
      %p107 = por %p105, %p106
      %p108 = scmp.ne.s32.totalorder %s100, %s103
      %p109 = scmp.eq.s32.totalorder %s22, 0
      %p110 = por %p108, %p109
      %p111 = scmp.ne.s32.totalorder %s100, %s103
      %p112 = scmp.eq.s32.totalorder %s27, 7
      %p113 = por %p111, %p112
      %p114 = scmp.ne.s32.totalorder %s103, %s104
      %p115 = scmp.eq.s32.totalorder %s27, 0
      %p116 = por %p114, %p115
      %p117 = scmp.ne.s32.totalorder %s103, %s104
      %p118 = scmp.eq.s32.totalorder %s28, 7
      %p119 = por %p117, %p118
      %p121 = scmp.ne.s32.totalorder %s104, %s120
      %p122 = scmp.eq.s32.totalorder %s28, 0
      %p123 = por %p121, %p122
      %s124 = ssub.s32 %s22, %s29
      %p125 = scmp.eq.s32.totalorder %s124, 0
      %s127 = sadd.s32 %s126, 1
      %s128 = scalar_select %p125, %s126, %s127
      %p131 = pneg %p125
      %p132 = scmp.eq.s32.totalorder %s22, 7
      %p133 = por %p131, %p132
      %p134 = scmp.ne.s32.totalorder %s126, %s129
      %p135 = scmp.eq.s32.totalorder %s22, 0
      %p136 = por %p134, %p135
      %p137 = scmp.ne.s32.totalorder %s126, %s129
      %p138 = scmp.eq.s32.totalorder %s27, 7
      %p139 = por %p137, %p138
      %p140 = scmp.ne.s32.totalorder %s129, %s130
      %p141 = scmp.eq.s32.totalorder %s27, 0
      %p142 = por %p140, %p141
      %p143 = scmp.ne.s32.totalorder %s129, %s130
      %p144 = scmp.eq.s32.totalorder %s28, 7
      %p145 = por %p143, %p144
      %p147 = scmp.ne.s32.totalorder %s130, %s146
      %p148 = scmp.eq.s32.totalorder %s28, 0
      %p149 = por %p147, %p148
      %s150 = ssub.s32 %s22, %s29
      %p151 = scmp.eq.s32.totalorder %s150, 0
      %s153 = sadd.s32 %s152, 1
      %s154 = scalar_select %p151, %s152, %s153
      %p157 = pneg %p151
      %p158 = scmp.eq.s32.totalorder %s22, 7
      %p159 = por %p157, %p158
      %p160 = scmp.ne.s32.totalorder %s152, %s155
      %p161 = scmp.eq.s32.totalorder %s22, 0
      %p162 = por %p160, %p161
      %p163 = scmp.ne.s32.totalorder %s152, %s155
      %p164 = scmp.eq.s32.totalorder %s27, 7
      %p165 = por %p163, %p164
      %p166 = scmp.ne.s32.totalorder %s155, %s156
      %p167 = scmp.eq.s32.totalorder %s27, 0
      %p168 = por %p166, %p167
      %p169 = scmp.ne.s32.totalorder %s155, %s156
      %p170 = scmp.eq.s32.totalorder %s28, 7
      %p171 = por %p169, %p170
      %p173 = scmp.ne.s32.totalorder %s156, %s172
      %p174 = scmp.eq.s32.totalorder %s28, 0
      %p175 = por %p173, %p174
      %s176 = ssub.s32 %s22, %s29
      %p177 = scmp.eq.s32.totalorder %s176, 0
      %s179 = sadd.s32 %s178, 1
      %s180 = scalar_select %p177, %s178, %s179
      %p183 = pneg %p177
      %p184 = scmp.eq.s32.totalorder %s22, 7
      %p185 = por %p183, %p184
      %p186 = scmp.ne.s32.totalorder %s178, %s181
      %p187 = scmp.eq.s32.totalorder %s22, 0
      %p188 = por %p186, %p187
      %p189 = scmp.ne.s32.totalorder %s178, %s181
      %p190 = scmp.eq.s32.totalorder %s27, 7
      %p191 = por %p189, %p190
      %p192 = scmp.ne.s32.totalorder %s181, %s182
      %p193 = scmp.eq.s32.totalorder %s27, 0
      %p194 = por %p192, %p193
      %p195 = scmp.ne.s32.totalorder %s181, %s182
      %p196 = scmp.eq.s32.totalorder %s28, 7
      %p197 = por %p195, %p196
      %p199 = scmp.ne.s32.totalorder %s182, %s198
      %p200 = scmp.eq.s32.totalorder %s28, 0
      %p201 = por %p199, %p200
      %p202 = scmp.le.s32.totalorder 1, %s22
      %p203 = scmp.lt.s32.totalorder %s22, 9
      %p204 = pnand %p202, %p203
      %p205 = pneg %p204
      // Predicated region
      $region9: #{wave_pool.1} parent=5 // pred_check
        _
      $region10: #{wave_pool.1} parent=5 // pred_check_branch
        %207 = sbr.rel (%p204) target = $region12
      $region11: #{wave_pool.1} parent=5 // pred_region
        %s208 = ssub.s32 %s22, 1
        // Predicated region
        $region13: #{wave_pool.1} parent=11 // pred_check
          %p209 = pneg %p43
        $region14: #{wave_pool.1} parent=11 // pred_check_branch
          %211 = sbr.rel (%p209) target = $region16
        $region15: #{wave_pool.1} parent=11 // pred_region
          _
        $region16: #{wave_pool.1} parent=11 // pred_fallthru
          _
        // Predicated region
        $region17: #{wave_pool.1} parent=11 // pred_check
          %p212 = pneg %p64
        $region18: #{wave_pool.1} parent=11 // pred_check_branch
          %214 = sbr.rel (%p212) target = $region20
        $region19: #{wave_pool.1} parent=11 // pred_region
          _
        $region20: #{wave_pool.1} parent=11 // pred_fallthru
          _
      $region12: #{wave_pool.1} parent=5 // pred_fallthru
        _
      %p215 = scmp.lt.s32.totalorder %s22, 8
      // Predicated region
      $region21: #{wave_pool.1} parent=5 // pred_check
        %p216 = pneg %p215
      $region22: #{wave_pool.1} parent=5 // pred_check_branch
        %218 = sbr.rel (%p216) target = $region24
      $region23: #{wave_pool.1} parent=5 // pred_region
        // Predicated region
        $region25: #{wave_pool.1} parent=23 // pred_check
          %p219 = pneg %p84
        $region26: #{wave_pool.1} parent=23 // pred_check_branch
          %221 = sbr.rel (%p219) target = $region28
        $region27: #{wave_pool.1} parent=23 // pred_region
          %p222 = scmp.lt.s32.totalorder %s22, 7
          %s223 = scalar_select %p222, %s22, 7
          %s224 = smul.addr %s223, 8
          %s225 = scalar_lea.vmem %s2, %s224
        $region28: #{wave_pool.1} parent=23 // pred_fallthru
          _
      $region24: #{wave_pool.1} parent=5 // pred_fallthru
        _
      %p226 = scmp.le.s32.totalorder 1, %s22
      %p227 = scmp.lt.s32.totalorder %s22, 9
      %p228 = pnand %p226, %p227
      %p229 = pneg %p228
      // Predicated region
      $region29: #{wave_pool.1} parent=5 // pred_check
        _
      $region30: #{wave_pool.1} parent=5 // pred_check_branch
        %231 = sbr.rel (%p228) target = $region32
      $region31: #{wave_pool.1} parent=5 // pred_region
        %s232 = ssub.s32 %s22, 1
        %p233 = pneg %p43
        %p234 = pneg %p40
        %p235 = pneg %p64
        %p236 = pneg %p61
        %p237 = scmp.lt.s32.totalorder %s27, 7
        %s238 = scalar_select %p237, %s27, 7
        %s239 = smul.addr %s238, 8
        %s240 = scalar_lea.vmem %s2, %s239
        %p241 = pneg %p90
        %p242 = pneg %p87
        %p243 = pneg %p116
        %p244 = pneg %p113
        %s245 = sand.u32 %s103, 1
        %s246 = scalar_lea.sflag [#allocation3], %s245
        %s247 = sand.u32 %s103, 1
        %s248 = smul.addr %s247, 8
        %s249 = scalar_lea.vmem [#allocation2], %s248
        %p250 = pneg %p142
        %p251 = pneg %p139
        %s252 = sand.u32 %s27, 1
        %s253 = scalar_lea.sflag [#allocation5], %s252
        %s254 = sand.u32 %s129, 1
        %s255 = smul.addr %s254, 8
        %s256 = scalar_lea.vmem [#allocation4], %s255
        %p257 = pneg %p168
        %p258 = pneg %p165
        %s259 = sand.u32 %s27, 1
        %s260 = scalar_lea.sflag [#allocation5], %s259
        %s261 = sand.u32 %s155, 1
        %s262 = smul.addr %s261, 8
        %s263 = scalar_lea.vmem [#allocation6], %s262
        %p264 = pneg %p194
        %p265 = pneg %p191
        %s266 = sand.u32 %s181, 1
        %s267 = scalar_lea.sflag [#allocation8], %s266
        %s268 = sand.u32 %s181, 1
        %s269 = smul.addr %s268, 8
        %s270 = scalar_lea.vmem [#allocation7], %s269
        %p271 = scmp.lt.s32.totalorder %s27, 7
        %s272 = scalar_select %p271, %s27, 7
        %s273 = smul.addr %s272, 8
        %s274 = scalar_lea.vmem %s2, %s273
        %v275 = vld [vmem:[%s274] sm:$0xff]
        %277 = vrot.lane.b32.xlu0 %v275, 112
        %v278 = vpop.permute.xlu0 %277
        %v280 = vadd.f32 %v275, %v278
        %281 = vrot.lane.b32.xlu0 %v275, 16
        %v282 = vpop.permute.xlu0 %281
        %v284 = vsub.f32 %v275, %v282
        %v285 = vld [vmem:[%s0] sm:$0xff]
        %v286 = vld [vmem:[%s0 + $0x8] sm:$0xff]
        %v287 = vld [vmem:[%s1] sm:$0xff]
        %v288 = vld [vmem:[%s1 + $0x8] sm:$0xff]
        %vm289 = vcmask 130048
        %v291 = vsel %vm289, %v280, 0
        %293 = vmatprep.subr.mxu0 0.0
        %294 = vmatpush1.msra.mxu0 %v285
        %295 = vmatprep.subr.mxu0 0.0
        %296 = vmatpush1.msra.mxu0 %v286
        %297 = vmatprep.subr.mxu0 0.0
        %298 = vmatpush1.msra.mxu0 0.0
        %299 = vmatprep.subr.mxu0 0.0
        %300 = vmatpush1.msra.mxu0 0.0
        %301 = vmatprep.subr.mxu0 0.0
        %302 = vmatpush1.msra.mxu0 0.0
        %303 = vmatprep.subr.mxu0 0.0
        %304 = vmatpush1.msra.mxu0 0.0
        %305 = vmatprep.subr.mxu0 0.0
        %306 = vmatpush1.msra.mxu0 0.0
        %307 = vmatprep.subr.mxu0 0.0
        %308 = vmatpush1.msra.mxu0 0.0
        %309 = vmatprep.subr.mxu0 0.0
        %310 = vmatpush1.msra.mxu0 0.0
        %311 = vmatprep.subr.mxu0 0.0
        %312 = vmatpush1.msra.mxu0 0.0
        %313 = vmatprep.subr.mxu0 0.0
        %314 = vmatpush1.msra.mxu0 0.0
        %315 = vmatprep.subr.mxu0 0.0
        %316 = vmatpush1.msra.mxu0 0.0
        %317 = vmatprep.subr.mxu0 0.0
        %318 = vmatpush1.msra.mxu0 0.0
        %319 = vmatprep.subr.mxu0 0.0
        %320 = vmatpush1.msra.mxu0 0.0
        %321 = vmatprep.subr.mxu0 0.0
        %322 = vmatpush1.msra.mxu0 0.0
        %323 = vmatprep.subr.mxu0 0.0
        %324 = vmatpush1.msra.mxu0 0.0
        %325 = vmatprep.subr.mxu0 0.0
        %326 = vmatpush1.msra.mxu0 0.0
        %327 = vmatprep.subr.mxu0 0.0
        %328 = vmatpush1.msra.mxu0 0.0
        %329 = vmatprep.subr.mxu0 0.0
        %330 = vmatpush1.msra.mxu0 0.0
        %331 = vmatprep.subr.mxu0 0.0
        %332 = vmatpush1.msra.mxu0 0.0
        %333 = vmatprep.subr.mxu0 0.0
        %334 = vmatpush1.msra.mxu0 0.0
        %335 = vmatprep.subr.mxu0 0.0
        %336 = vmatpush1.msra.mxu0 0.0
        %337 = vmatprep.subr.mxu0 0.0
        %338 = vmatpush1.msra.mxu0 0.0
        %339 = vmatprep.subr.mxu0 0.0
        %340 = vmatpush1.msra.mxu0 0.0
        %341 = vmatprep.subr.mxu0 0.0
        %342 = vmatpush1.msra.mxu0 0.0
        %343 = vmatprep.subr.mxu0 0.0
        %344 = vmatpush1.msra.mxu0 0.0
        %345 = vmatprep.subr.mxu0 0.0
        %346 = vmatpush1.msra.mxu0 0.0
        %347 = vmatprep.subr.mxu0 0.0
        %348 = vmatpush1.msra.mxu0 0.0
        %349 = vmatprep.subr.mxu0 0.0
        %350 = vmatpush1.msra.mxu0 0.0
        %351 = vmatprep.subr.mxu0 0.0
        %352 = vmatpush1.msra.mxu0 0.0
        %353 = vmatprep.subr.mxu0 0.0
        %354 = vmatpush1.msra.mxu0 0.0
        %355 = vmatprep.subr.mxu0 0.0
        %356 = vmatpush1.msra.mxu0 0.0
        %357 = vmatprep.mubr.f32.mxu0 0.0
        %358 = vmatmul.mubr.f32.gmra.mrb[0].mxu0 %v291
        %v359 = vpop.f32.mrb[0].mxu0
        %v360 = vadd.f32 0.0, %v359
        %v361 = vpop.f32.mrb[0].mxu0
        %362 = vdwg.mxu0
        %vm363 = vcmask 64512
        %364 = vst.msk [vmem:[%s249] sm:$0xff] %vm363, %v360
        %365 = vmatprep.subr.mxu0 0.0
        %366 = vmatpush1.msra.mxu0 %v287
        %367 = vmatprep.subr.mxu0 0.0
        %368 = vmatpush1.msra.mxu0 %v288
        %369 = vmatprep.subr.mxu0 0.0
        %370 = vmatpush1.msra.mxu0 0.0
        %371 = vmatprep.subr.mxu0 0.0
        %372 = vmatpush1.msra.mxu0 0.0
        %373 = vmatprep.subr.mxu0 0.0
        %374 = vmatpush1.msra.mxu0 0.0
        %375 = vmatprep.subr.mxu0 0.0
        %376 = vmatpush1.msra.mxu0 0.0
        %377 = vmatprep.subr.mxu0 0.0
        %378 = vmatpush1.msra.mxu0 0.0
        %379 = vmatprep.subr.mxu0 0.0
        %380 = vmatpush1.msra.mxu0 0.0
        %381 = vmatprep.subr.mxu0 0.0
        %382 = vmatpush1.msra.mxu0 0.0
        %383 = vmatprep.subr.mxu0 0.0
        %384 = vmatpush1.msra.mxu0 0.0
        %385 = vmatprep.subr.mxu0 0.0
        %386 = vmatpush1.msra.mxu0 0.0
        %387 = vmatprep.subr.mxu0 0.0
        %388 = vmatpush1.msra.mxu0 0.0
        %389 = vmatprep.subr.mxu0 0.0
        %390 = vmatpush1.msra.mxu0 0.0
        %391 = vmatprep.subr.mxu0 0.0
        %392 = vmatpush1.msra.mxu0 0.0
        %393 = vmatprep.subr.mxu0 0.0
        %394 = vmatpush1.msra.mxu0 0.0
        %395 = vmatprep.subr.mxu0 0.0
        %396 = vmatpush1.msra.mxu0 0.0
        %397 = vmatprep.subr.mxu0 0.0
        %398 = vmatpush1.msra.mxu0 0.0
        %399 = vmatprep.subr.mxu0 0.0
        %400 = vmatpush1.msra.mxu0 0.0
        %401 = vmatprep.subr.mxu0 0.0
        %402 = vmatpush1.msra.mxu0 0.0
        %403 = vmatprep.subr.mxu0 0.0
        %404 = vmatpush1.msra.mxu0 0.0
        %405 = vmatprep.subr.mxu0 0.0
        %406 = vmatpush1.msra.mxu0 0.0
        %407 = vmatprep.subr.mxu0 0.0
        %408 = vmatpush1.msra.mxu0 0.0
        %409 = vmatprep.subr.mxu0 0.0
        %410 = vmatpush1.msra.mxu0 0.0
        %411 = vmatprep.subr.mxu0 0.0
        %412 = vmatpush1.msra.mxu0 0.0
        %413 = vmatprep.subr.mxu0 0.0
        %414 = vmatpush1.msra.mxu0 0.0
        %415 = vmatprep.subr.mxu0 0.0
        %416 = vmatpush1.msra.mxu0 0.0
        %417 = vmatprep.subr.mxu0 0.0
        %418 = vmatpush1.msra.mxu0 0.0
        %419 = vmatprep.subr.mxu0 0.0
        %420 = vmatpush1.msra.mxu0 0.0
        %421 = vmatprep.subr.mxu0 0.0
        %422 = vmatpush1.msra.mxu0 0.0
        %423 = vmatprep.subr.mxu0 0.0
        %424 = vmatpush1.msra.mxu0 0.0
        %425 = vmatprep.subr.mxu0 0.0
        %426 = vmatpush1.msra.mxu0 0.0
        %427 = vmatprep.subr.mxu0 0.0
        %428 = vmatpush1.msra.mxu0 0.0
        %429 = vmatprep.mubr.f32.mxu0 0.0
        %430 = vmatmul.mubr.f32.gmra.mrb[0].mxu0 %v291
        %v431 = vpop.f32.mrb[0].mxu0
        %v432 = vadd.f32 0.0, %v431
        %v433 = vpop.f32.mrb[0].mxu0
        %434 = vdwg.mxu0
        %435 = vst.msk [vmem:[%s256] sm:$0xff] %vm363, %v432
        %437 = vrot.lane.b32.xlu0 %v284, 112
        %v438 = vpop.permute.xlu0 %437
        %v439 = vsel %vm289, %v438, 0
        %441 = vmatprep.subr.mxu0 0.0
        %442 = vmatpush1.msra.mxu0 %v285
        %443 = vmatprep.subr.mxu0 0.0
        %444 = vmatpush1.msra.mxu0 %v286
        %445 = vmatprep.subr.mxu0 0.0
        %446 = vmatpush1.msra.mxu0 0.0
        %447 = vmatprep.subr.mxu0 0.0
        %448 = vmatpush1.msra.mxu0 0.0
        %449 = vmatprep.subr.mxu0 0.0
        %450 = vmatpush1.msra.mxu0 0.0
        %451 = vmatprep.subr.mxu0 0.0
        %452 = vmatpush1.msra.mxu0 0.0
        %453 = vmatprep.subr.mxu0 0.0
        %454 = vmatpush1.msra.mxu0 0.0
        %455 = vmatprep.subr.mxu0 0.0
        %456 = vmatpush1.msra.mxu0 0.0
        %457 = vmatprep.subr.mxu0 0.0
        %458 = vmatpush1.msra.mxu0 0.0
        %459 = vmatprep.subr.mxu0 0.0
        %460 = vmatpush1.msra.mxu0 0.0
        %461 = vmatprep.subr.mxu0 0.0
        %462 = vmatpush1.msra.mxu0 0.0
        %463 = vmatprep.subr.mxu0 0.0
        %464 = vmatpush1.msra.mxu0 0.0
        %465 = vmatprep.subr.mxu0 0.0
        %466 = vmatpush1.msra.mxu0 0.0
        %467 = vmatprep.subr.mxu0 0.0
        %468 = vmatpush1.msra.mxu0 0.0
        %469 = vmatprep.subr.mxu0 0.0
        %470 = vmatpush1.msra.mxu0 0.0
        %471 = vmatprep.subr.mxu0 0.0
        %472 = vmatpush1.msra.mxu0 0.0
        %473 = vmatprep.subr.mxu0 0.0
        %474 = vmatpush1.msra.mxu0 0.0
        %475 = vmatprep.subr.mxu0 0.0
        %476 = vmatpush1.msra.mxu0 0.0
        %477 = vmatprep.subr.mxu0 0.0
        %478 = vmatpush1.msra.mxu0 0.0
        %479 = vmatprep.subr.mxu0 0.0
        %480 = vmatpush1.msra.mxu0 0.0
        %481 = vmatprep.subr.mxu0 0.0
        %482 = vmatpush1.msra.mxu0 0.0
        %483 = vmatprep.subr.mxu0 0.0
        %484 = vmatpush1.msra.mxu0 0.0
        %485 = vmatprep.subr.mxu0 0.0
        %486 = vmatpush1.msra.mxu0 0.0
        %487 = vmatprep.subr.mxu0 0.0
        %488 = vmatpush1.msra.mxu0 0.0
        %489 = vmatprep.subr.mxu0 0.0
        %490 = vmatpush1.msra.mxu0 0.0
        %491 = vmatprep.subr.mxu0 0.0
        %492 = vmatpush1.msra.mxu0 0.0
        %493 = vmatprep.subr.mxu0 0.0
        %494 = vmatpush1.msra.mxu0 0.0
        %495 = vmatprep.subr.mxu0 0.0
        %496 = vmatpush1.msra.mxu0 0.0
        %497 = vmatprep.subr.mxu0 0.0
        %498 = vmatpush1.msra.mxu0 0.0
        %499 = vmatprep.subr.mxu0 0.0
        %500 = vmatpush1.msra.mxu0 0.0
        %501 = vmatprep.subr.mxu0 0.0
        %502 = vmatpush1.msra.mxu0 0.0
        %503 = vmatprep.subr.mxu0 0.0
        %504 = vmatpush1.msra.mxu0 0.0
        %505 = vmatprep.mubr.f32.mxu0 0.0
        %506 = vmatmul.mubr.f32.gmra.mrb[0].mxu0 %v439
        %v507 = vpop.f32.mrb[0].mxu0
        %v508 = vadd.f32 0.0, %v507
        %v509 = vpop.f32.mrb[0].mxu0
        %510 = vdwg.mxu0
        %511 = vst.msk [vmem:[%s263] sm:$0xff] %vm363, %v508
        %512 = vmatprep.subr.mxu0 0.0
        %513 = vmatpush1.msra.mxu0 %v287
        %514 = vmatprep.subr.mxu0 0.0
        %515 = vmatpush1.msra.mxu0 %v288
        %516 = vmatprep.subr.mxu0 0.0
        %517 = vmatpush1.msra.mxu0 0.0
        %518 = vmatprep.subr.mxu0 0.0
        %519 = vmatpush1.msra.mxu0 0.0
        %520 = vmatprep.subr.mxu0 0.0
        %521 = vmatpush1.msra.mxu0 0.0
        %522 = vmatprep.subr.mxu0 0.0
        %523 = vmatpush1.msra.mxu0 0.0
        %524 = vmatprep.subr.mxu0 0.0
        %525 = vmatpush1.msra.mxu0 0.0
        %526 = vmatprep.subr.mxu0 0.0
        %527 = vmatpush1.msra.mxu0 0.0
        %528 = vmatprep.subr.mxu0 0.0
        %529 = vmatpush1.msra.mxu0 0.0
        %530 = vmatprep.subr.mxu0 0.0
        %531 = vmatpush1.msra.mxu0 0.0
        %532 = vmatprep.subr.mxu0 0.0
        %533 = vmatpush1.msra.mxu0 0.0
        %534 = vmatprep.subr.mxu0 0.0
        %535 = vmatpush1.msra.mxu0 0.0
        %536 = vmatprep.subr.mxu0 0.0
        %537 = vmatpush1.msra.mxu0 0.0
        %538 = vmatprep.subr.mxu0 0.0
        %539 = vmatpush1.msra.mxu0 0.0
        %540 = vmatprep.subr.mxu0 0.0
        %541 = vmatpush1.msra.mxu0 0.0
        %542 = vmatprep.subr.mxu0 0.0
        %543 = vmatpush1.msra.mxu0 0.0
        %544 = vmatprep.subr.mxu0 0.0
        %545 = vmatpush1.msra.mxu0 0.0
        %546 = vmatprep.subr.mxu0 0.0
        %547 = vmatpush1.msra.mxu0 0.0
        %548 = vmatprep.subr.mxu0 0.0
        %549 = vmatpush1.msra.mxu0 0.0
        %550 = vmatprep.subr.mxu0 0.0
        %551 = vmatpush1.msra.mxu0 0.0
        %552 = vmatprep.subr.mxu0 0.0
        %553 = vmatpush1.msra.mxu0 0.0
        %554 = vmatprep.subr.mxu0 0.0
        %555 = vmatpush1.msra.mxu0 0.0
        %556 = vmatprep.subr.mxu0 0.0
        %557 = vmatpush1.msra.mxu0 0.0
        %558 = vmatprep.subr.mxu0 0.0
        %559 = vmatpush1.msra.mxu0 0.0
        %560 = vmatprep.subr.mxu0 0.0
        %561 = vmatpush1.msra.mxu0 0.0
        %562 = vmatprep.subr.mxu0 0.0
        %563 = vmatpush1.msra.mxu0 0.0
        %564 = vmatprep.subr.mxu0 0.0
        %565 = vmatpush1.msra.mxu0 0.0
        %566 = vmatprep.subr.mxu0 0.0
        %567 = vmatpush1.msra.mxu0 0.0
        %568 = vmatprep.subr.mxu0 0.0
        %569 = vmatpush1.msra.mxu0 0.0
        %570 = vmatprep.subr.mxu0 0.0
        %571 = vmatpush1.msra.mxu0 0.0
        %572 = vmatprep.subr.mxu0 0.0
        %573 = vmatpush1.msra.mxu0 0.0
        %574 = vmatprep.subr.mxu0 0.0
        %575 = vmatpush1.msra.mxu0 0.0
        %576 = vmatprep.mubr.f32.mxu0 0.0
        %577 = vmatmul.mubr.f32.gmra.mrb[0].mxu0 %v439
        %v578 = vpop.f32.mrb[0].mxu0
        %v579 = vadd.f32 0.0, %v578
        %v580 = vpop.f32.mrb[0].mxu0
        %581 = vdwg.mxu0
        %582 = vst.msk [vmem:[%s270] sm:$0xff] %vm363, %v579
        %s583 = sand.u32 %s103, 1
        %s584 = scalar_lea.sflag [#allocation3], %s583
        %s585 = sand.u32 %s103, 1
        %s586 = smul.addr %s585, 8
        %s587 = scalar_lea.vmem [#allocation2], %s586
        %s588 = sand.u32 %s27, 1
        %s589 = scalar_lea.sflag [#allocation5], %s588
        %s590 = sand.u32 %s129, 1
        %s591 = smul.addr %s590, 8
        %s592 = scalar_lea.vmem [#allocation4], %s591
        %s593 = sand.u32 %s27, 1
        %s594 = scalar_lea.sflag [#allocation5], %s593
        %s595 = sand.u32 %s155, 1
        %s596 = smul.addr %s595, 8
        %s597 = scalar_lea.vmem [#allocation6], %s596
        %s598 = sand.u32 %s181, 1
        %s599 = scalar_lea.sflag [#allocation8], %s598
        %s600 = sand.u32 %s181, 1
        %s601 = smul.addr %s600, 8
        %s602 = scalar_lea.vmem [#allocation7], %s601
        // Predicated region
        $region33: #{wave_pool.1} parent=31 // pred_check
          %p603 = pneg %p113
        $region34: #{wave_pool.1} parent=31 // pred_check_branch
          %605 = sbr.rel (%p603) target = $region36
        $region35: #{wave_pool.1} parent=31 // pred_region
          %s607 = ssub.s32 128, 128
          %608 = vsyncadd %s584, %s607
          %s609 = smul.addr %s27, 128
          %s610 = scalar_lea.hbm %s3, %s609
          %s612 = sshll.u32 %s587, 4
          %s613 = int_to_ptr.vmem [resolvable:$true] %s612
          %615 = dma.vmem_to_hbm [thread:$0]  %s613, 128, %s610, %s584
        $region36: #{wave_pool.1} parent=31 // pred_fallthru
          _
        // Predicated region
        $region37: #{wave_pool.1} parent=31 // pred_check
          %p616 = pneg %p139
        $region38: #{wave_pool.1} parent=31 // pred_check_branch
          %618 = sbr.rel (%p616) target = $region40
        $region39: #{wave_pool.1} parent=31 // pred_region
          %s620 = ssub.s32 128, 128
          %621 = vsyncadd %s589, %s620
          %s622 = smul.addr %s27, 128
          %s623 = scalar_lea.hbm %s4, %s622
          %s625 = sshll.u32 %s592, 4
          %s626 = int_to_ptr.vmem [resolvable:$true] %s625
          %628 = dma.vmem_to_hbm [thread:$0]  %s626, 128, %s623, %s589
        $region40: #{wave_pool.1} parent=31 // pred_fallthru
          _
        // Predicated region
        $region41: #{wave_pool.1} parent=31 // pred_check
          %p629 = pneg %p165
        $region42: #{wave_pool.1} parent=31 // pred_check_branch
          %631 = sbr.rel (%p629) target = $region44
        $region43: #{wave_pool.1} parent=31 // pred_region
          %s633 = ssub.s32 128, 128
          %634 = vsyncadd %s594, %s633
          %s635 = smul.addr %s27, 128
          %s636 = scalar_lea.hbm %s5, %s635
          %s638 = sshll.u32 %s597, 4
          %s639 = int_to_ptr.vmem [resolvable:$true] %s638
          %641 = dma.vmem_to_hbm [thread:$0]  %s639, 128, %s636, %s594
        $region44: #{wave_pool.1} parent=31 // pred_fallthru
          _
        // Predicated region
        $region45: #{wave_pool.1} parent=31 // pred_check
          %p642 = pneg %p191
        $region46: #{wave_pool.1} parent=31 // pred_check_branch
          %644 = sbr.rel (%p642) target = $region48
        $region47: #{wave_pool.1} parent=31 // pred_region
          %s646 = ssub.s32 128, 128
          %647 = vsyncadd %s599, %s646
          %s648 = smul.addr %s27, 128
          %s649 = scalar_lea.hbm %s6, %s648
          %s651 = sshll.u32 %s602, 4
          %s652 = int_to_ptr.vmem [resolvable:$true] %s651
          %654 = dma.vmem_to_hbm [thread:$0]  %s652, 128, %s649, %s599
        $region48: #{wave_pool.1} parent=31 // pred_fallthru
          _
      $region32: #{wave_pool.1} parent=5 // pred_fallthru
        _
      %p655 = scmp.le.s32.totalorder 2, %s22
      // Predicated region
      $region49: #{wave_pool.1} parent=5 // pred_check
        %p656 = pneg %p655
      $region50: #{wave_pool.1} parent=5 // pred_check_branch
        %658 = sbr.rel (%p656) target = $region52
      $region51: #{wave_pool.1} parent=5 // pred_region
        %s659 = ssub.s32 %s22, 2
        // Predicated region
        $region53: #{wave_pool.1} parent=51 // pred_check
          %p660 = pneg %p119
        $region54: #{wave_pool.1} parent=51 // pred_check_branch
          %662 = sbr.rel (%p660) target = $region56
        $region55: #{wave_pool.1} parent=51 // pred_region
          %s663 = sand.u32 %s104, 1
          %s664 = scalar_lea.sflag [#allocation3], %s663
          %s665 = sand.u32 %s104, 1
          %s666 = smul.addr %s665, 8
          %s667 = scalar_lea.vmem [#allocation2], %s666
          %668 = dma.done %s664, 128
        $region56: #{wave_pool.1} parent=51 // pred_fallthru
          _
        // Predicated region
        $region57: #{wave_pool.1} parent=51 // pred_check
          %p669 = pneg %p145
        $region58: #{wave_pool.1} parent=51 // pred_check_branch
          %671 = sbr.rel (%p669) target = $region60
        $region59: #{wave_pool.1} parent=51 // pred_region
          %s672 = sand.u32 %s28, 1
          %s673 = scalar_lea.sflag [#allocation5], %s672
          %s674 = sand.u32 %s130, 1
          %s675 = smul.addr %s674, 8
          %s676 = scalar_lea.vmem [#allocation4], %s675
          %677 = dma.done %s673, 128
        $region60: #{wave_pool.1} parent=51 // pred_fallthru
          _
        // Predicated region
        $region61: #{wave_pool.1} parent=51 // pred_check
          %p678 = pneg %p171
        $region62: #{wave_pool.1} parent=51 // pred_check_branch
          %680 = sbr.rel (%p678) target = $region64
        $region63: #{wave_pool.1} parent=51 // pred_region
          %s681 = sand.u32 %s28, 1
          %s682 = scalar_lea.sflag [#allocation5], %s681
          %s683 = sand.u32 %s156, 1
          %s684 = smul.addr %s683, 8
          %s685 = scalar_lea.vmem [#allocation6], %s684
          %686 = dma.done %s682, 128
        $region64: #{wave_pool.1} parent=51 // pred_fallthru
          _
        // Predicated region
        $region65: #{wave_pool.1} parent=51 // pred_check
          %p687 = pneg %p197
        $region66: #{wave_pool.1} parent=51 // pred_check_branch
          %689 = sbr.rel (%p687) target = $region68
        $region67: #{wave_pool.1} parent=51 // pred_region
          %s690 = sand.u32 %s182, 1
          %s691 = scalar_lea.sflag [#allocation8], %s690
          %s692 = sand.u32 %s182, 1
          %s693 = smul.addr %s692, 8
          %s694 = scalar_lea.vmem [#allocation7], %s693
          %695 = dma.done %s691, 128
        $region68: #{wave_pool.1} parent=51 // pred_fallthru
          _
      $region52: #{wave_pool.1} parent=5 // pred_fallthru
        _
    $region6: #{wave_pool.1} parent=1 // loop_footer
      %s26 = sadd.s32 1, %s22
    $region7: #{wave_pool.1} parent=1 // loop_footer_branch
      %21 = sbr.rel target = $region3
    $region8: #{wave_pool.1} parent=1 // loop_exit
      _
    %696 = vsyncpa [#allocation3], 1
    %s697 = scalar_lea.sflag [#allocation3], 1
    %698 = vsyncpa %s697, 1
    %699 = vsyncpa [#allocation5], 1
    %s700 = scalar_lea.sflag [#allocation5], 1
    %701 = vsyncpa %s700, 1
    %702 = vsyncpa [#allocation8], 1
    %s703 = scalar_lea.sflag [#allocation8], 1
    %704 = vsyncpa %s703, 1

</llo_original>
